<compile_context>
chip_gen: v6e
topology: v6e:2x2x1
jax: 0.10.0
libtpu: 0.0.40
codegen_flags: <defaults>
</compile_context>

<pallas_src>
import jax
import jax.numpy as jnp
from jax.experimental import pallas as pl
from jax.experimental.pallas import tpu as pltpu

_LANE = 128
_MIN_GRID_STEPS = 8  # pipeline depth + >=2 balanced steps per v7x TensorCore


def _softmax_axis1_kernel(x_ref, o_ref):
    # Block: (1, N, ...).  Softmax over axis 1.  Every reduction stays inside a
    # spatial column, so garbage OOB lanes in a ragged final block never mix
    # with real data and are never written back.
    x = x_ref[...].astype(jnp.float32)            # cast on the loaded vregs only
    m = jnp.max(x, axis=1, keepdims=True)
    e = jnp.exp(x - m)
    s = jnp.sum(e, axis=1, keepdims=True)
    o_ref[...] = (e / s).astype(o_ref.dtype)      # exact denominator (HBM-bound)


def _vmem_budget_bytes() -> int:
    """Per-grid-step working-set budget, chosen per TPU generation."""
    try:
        kind = jax.devices()[0].device_kind.lower()
    except Exception:  # pragma: no cover
        kind = ""
    if "v5 lite" in kind or "v5e" in kind or "v5lite" in kind:
        return 6 << 20     # v5e: ~1 MiB f32 io blocks, well under 16 MiB scoped default
    if "v6" in kind:
        return 24 << 20    # v6e: ~4 MiB io blocks inside the 32 MiB scoped VMEM
    if "7" in kind:
        return 16 << 20    # v7x: 64 MiB physical VMEM -- favor grid steps, not bigger tiles
    return 16 << 20        # unknown / v4 / v5p: conservative middle ground


def _plan_spatial_tile(n_rows: int, row_align: int, c: int, rows_budget: int):
    """Pick a spatial tile (in 128-lane rows) and the resulting tile count."""
    tile = max(row_align, rows_budget - rows_budget % row_align)
    if tile >= n_rows:
        tile = n_rows                      # full extent (alignment not required)
    n_tiles = -(-n_rows // tile)
    # Shrink until there are enough parallel grid steps (DMA pipelining and
    # balanced work for both v7x TensorCores).
    while c * n_tiles < _MIN_GRID_STEPS and tile > row_align:
        new_tile = tile // 2
        new_tile = max(row_align, new_tile - new_tile % row_align)
        if new_tile == tile:
            break
        tile = new_tile
        n_tiles = -(-n_rows // tile)
    return tile, n_tiles


class DiceLoss:
    """JAX/Pallas port of the (truncated) PyTorch DiceLoss forward."""

    def __init__(self, num_classes: int):
        self.num_classes = num_classes  # module has no learnable parameters

    def __call__(self, prediction: jax.Array, label: jax.Array) -> jax.Array:
        assert prediction.shape == label.shape
        C = prediction.shape[0]
        assert C == self.num_classes

        orig_shape = prediction.shape
        dtype = prediction.dtype
        itemsize = jnp.dtype(dtype).itemsize
        N = orig_shape[1]
        HW = 1
        for d in orig_shape[2:]:
            HW *= d

        # ---- tile sizing: budget against the f32 working set ----------------
        # per block element: in+out double-buffered in the io dtype + ~2 f32 temps
        per_elem_bytes = 4 * itemsize + 2 * 4
        per_row_bytes = N * _LANE * per_elem_bytes          # one 128-lane row
        rows_budget = max(1, _vmem_budget_bytes() // per_row_bytes)
        sub_mult = 32 // itemsize                           # 8 f32 / 16 bf16 / 32 int8

        x = prediction.reshape(C, N, HW)

        if HW % _LANE == 0:
            # Free view: spatial -> (S, 128) planes.  N stays a plane axis, so
            # the axis-1 max/sum are pure VPU elementwise combines (no XLU
            # cross-sublane reduce, no sublane padding waste for small N).
            S = HW // _LANE
            tile_s, n_tiles = _plan_spatial_tile(S, sub_mult, C, rows_budget)
            x = x.reshape(C, N, S, _LANE)
            block = (1, N, tile_s, _LANE)
            index_map = lambda c, s: (c, 0, s, 0)
            out_struct = jax.ShapeDtypeStruct((C, N, S, _LANE), dtype)
            block_elems = N * tile_s * _LANE
        else:
            # Ragged spatial extent: tile the raw (C, N, HW) view with a
            # 128-multiple lane block; Pallas handles the partial final block
            # (no host-side pad, no post-kernel slice).
            n_rows = -(-HW // _LANE)
            tile_r, n_tiles = _plan_spatial_tile(n_rows, 1, C, rows_budget)
            block_hw = HW if tile_r >= n_rows else tile_r * _LANE
            block = (1, N, block_hw)
            index_map = lambda c, s: (c, 0, s)
            out_struct = jax.ShapeDtypeStruct((C, N, HW), dtype)
            block_elems = N * block_hw

        vmem_est = block_elems * per_elem_bytes
        vmem_limit = int(max(32 << 20, vmem_est + (4 << 20)))

        total = C * N * HW
        cost = pl.CostEstimate(
            flops=5 * total,
            transcendentals=total,
            bytes_accessed=2 * total * itemsize,
        )

        out = pl.pallas_call(
            _softmax_axis1_kernel,
            out_shape=out_struct,
            grid=(C, n_tiles),
            in_specs=[pl.BlockSpec(block, index_map)],
            out_specs=pl.BlockSpec(block, index_map),
            compiler_params=pltpu.CompilerParams(
                dimension_semantics=("parallel", "parallel"),
                vmem_limit_bytes=vmem_limit,
            ),
            cost_estimate=cost,
        )(x)

        return out.reshape(orig_shape)


if __name__ == "__main__":
    num_classes = 4
    # prediction / label shape: (C=num_classes, N=2, H=16, W=16)
    key = jax.random.PRNGKey(0)
    kp, kl = jax.random.split(key)
    prediction = jax.random.normal(kp, (num_classes, 2, 16, 16), dtype=jnp.float32)
    label = jax.random.normal(kl, (num_classes, 2, 16, 16), dtype=jnp.float32)

    loss_mod = DiceLoss(num_classes)
    out = jax.block_until_ready(loss_mod(prediction, label))

    # Correctness check against plain-JAX softmax over axis 1 (exact denominator
    # in the kernel, so a tight tolerance is used).
    ref = jax.nn.softmax(prediction, axis=1)
    assert out.shape == prediction.shape
    assert out.dtype == prediction.dtype
    assert jnp.allclose(out, ref, atol=1e-6, rtol=1e-6)

    print("KERNEL_OK")
</pallas_src>

<mosaic_0001>
module attributes {stable_mosaic.version = 11 : i64} {
  func.func @_softmax_axis1_kernel(%arg0: i32, %arg1: i32, %arg2: memref<1x2x2x128xf32, #tpu.memory_space<vmem>>, %arg3: memref<1x2x2x128xf32, #tpu.memory_space<vmem>>) attributes {dimension_semantics = [#tpu.dimension_semantics<parallel>, #tpu.dimension_semantics<parallel>], iteration_bounds = array<i64: 4, 1>, scalar_prefetch = 0 : i64, scratch_operands = 0 : i64, tpu.core_type = #tpu.core_type<tc>, window_params = [{transform_indices = @transform_0, window_bounds = array<i64: 1, 2, 2, 128>}, {transform_indices = @transform_1, window_bounds = array<i64: 1, 2, 2, 128>}]} {
    %c0 = arith.constant 0 : index
    %c0_0 = arith.constant 0 : index
    %c0_1 = arith.constant 0 : index
    %c0_2 = arith.constant 0 : index
    %0 = vector.load %arg2[%c0, %c0_0, %c0_1, %c0_2] : memref<1x2x2x128xf32, #tpu.memory_space<vmem>>, vector<1x2x2x128xf32>
    %cst = arith.constant dense<0xFF800000> : vector<1x2x128xf32>
    %1 = vector.multi_reduction <maximumf>, %0, %cst [1] : vector<1x2x2x128xf32> to vector<1x2x128xf32>
    %2 = vector.shape_cast %1 : vector<1x2x128xf32> to vector<1x1x2x128xf32>
    %3 = vector.broadcast %2 : vector<1x1x2x128xf32> to vector<1x2x2x128xf32>
    %4 = arith.subf %0, %3 : vector<1x2x2x128xf32>
    %5 = math.exp %4 : vector<1x2x2x128xf32>
    %cst_3 = arith.constant dense<0.000000e+00> : vector<1x2x128xf32>
    %6 = vector.multi_reduction <add>, %5, %cst_3 [1] : vector<1x2x2x128xf32> to vector<1x2x128xf32>
    %7 = vector.shape_cast %6 : vector<1x2x128xf32> to vector<1x1x2x128xf32>
    %8 = vector.broadcast %7 : vector<1x1x2x128xf32> to vector<1x2x2x128xf32>
    %9 = arith.divf %5, %8 : vector<1x2x2x128xf32>
    %c0_4 = arith.constant 0 : index
    %c0_5 = arith.constant 0 : index
    %c0_6 = arith.constant 0 : index
    %c0_7 = arith.constant 0 : index
    %10 = vector.load %arg3[%c0_4, %c0_5, %c0_6, %c0_7] : memref<1x2x2x128xf32, #tpu.memory_space<vmem>>, vector<1x2x2x128xf32>
    tpu.vector_store %arg3[%c0_4, %c0_5, %c0_6, %c0_7], %9 {strides = array<i32>} : memref<1x2x2x128xf32, #tpu.memory_space<vmem>>, vector<1x2x2x128xf32>,
    return
  }
  func.func @transform_0(%arg0: i32, %arg1: i32) -> (i32, i32, i32, i32) {
    %c0_i32 = arith.constant 0 : i32
    %c0_i32_0 = arith.constant 0 : i32
    %c0_i32_1 = arith.constant 0 : i32
    return %arg0, %c0_i32, %arg1, %c0_i32_0 : i32, i32, i32, i32
  }
  func.func @transform_1(%arg0: i32, %arg1: i32) -> (i32, i32, i32, i32) {
    %c0_i32 = arith.constant 0 : i32
    %c0_i32_0 = arith.constant 0 : i32
    %c0_i32_1 = arith.constant 0 : i32
    return %arg0, %c0_i32, %arg1, %c0_i32_0 : i32, i32, i32, i32
  }
}

</mosaic_0001>

<llo_original>
// kernel: tpu_custom_call.1
$region0: #{tpu_custom_call.1}
  #allocation0 [shape = 'u32[]', space=smem, size = 0x4, offset = 0x4, fixed_abs, tag = 'smem constant byte address 0x4 - core index']
  #allocation1 [shape = 'u32[144,128]{1,0:T(1,128)}', space=vmem, size = 0x12000, scoped, tag = 'internal scratch']
  %s0 = inlined_call_operand.hbm [shape: f32[4,2,2,128], index: 0, kind: input, shape index: {}]
  %s1 = inlined_call_operand.hbm [shape: f32[4,2,2,128], index: 1, kind: output, shape index: {}]
  %s2 = sld [smem:[#allocation0]]
  $region41: #{tpu_custom_call.1} parent=0
    _
  %s4 = ssub.s32 1, %s2
  %s5 = scalar_select 0, %s4, %s2
  $region1: #{tpu_custom_call.1} parent=0
    #allocation2 [shape = 'u8[4096]{0}', space=vmem, size = 0x1000, scoped, tag = 'input window, operand 0']
    #allocation3 [shape = 's32[2]{0}', space=sflag, size = 0x8, scoped, tag = 'scoped memory for tpu_custom_call.1']
    #allocation4 [shape = 's32[2]{0}', space=sflag, size = 0x8, scoped, tag = 'scoped memory for tpu_custom_call.1']
    #allocation5 [shape = 'u8[4096]{0}', space=vmem, size = 0x1000, scoped, tag = 'output window, operand 0']
    %6 = vsyncpa [#allocation3], 0
    %s7 = scalar_lea.sflag [#allocation3], 1
    %8 = vsyncpa %s7, 0
    %9 = vsyncpa [#allocation4], 0
    %s10 = scalar_lea.sflag [#allocation4], 1
    %11 = vsyncpa %s10, 0
    loop: start=0, step=1, limit=6
    $region2: #{tpu_custom_call.1} parent=1 // loop_pre_header
      _
    $region3: #{tpu_custom_call.1} parent=1 // loop_header
      %s13 = sphi 0, %s17
      %p14 = scmp.ge.s32.totalorder %s13, 6
      %s20 = sphi 0, %s32
      %s21 = sphi 0, %s28
      %s22 = sphi 0, %s20
      %s23 = sphi 0, %s21
      %s24 = sphi 0, %s22
      %s25 = sphi 0, %s23
      %s37 = sphi 0, %s39
      %s40 = sphi 0, %s37
      %s41 = sphi 0, %s40
      %s57 = sphi 0, %s41
      %s65 = sphi 0, %s67
      %s68 = sphi 0, %s65
      %s69 = sphi 0, %s68
      %s85 = sphi 0, %s69
    $region4: #{tpu_custom_call.1} parent=1 // loop_header_branch
      %16 = sbr.rel (%p14) target = $region8
    $region5: #{tpu_custom_call.1} parent=1 // loop_body
      %s18 = ssub.s32 %s13, 1
      %s19 = ssub.s32 %s13, 2
      %s26 = sadd.s32 1, %s21
      %p27 = scmp.ge.s32.totalorder %s26, 1
      %s28 = scalar_select %p27, 0, %s26
      %s29 = sadd.s32 1, %s20
      %s30 = scalar_select %p27, %s29, %s20
      %p31 = scmp.ge.s32.totalorder %s30, 4
      %s32 = scalar_select %p31, 0, %s30
      %s33 = ssub.s32 %s20, %s32
      %s34 = ssub.s32 %s21, %s28
      %s35 = sor.u32 %s33, %s34
      %p36 = scmp.eq.s32.totalorder %s35, 0
      %s38 = sadd.s32 %s37, 1
      %s39 = scalar_select %p36, %s37, %s38
      %p42 = pneg %p36
      %p43 = scmp.eq.s32.totalorder %s13, 3
      %p44 = por %p42, %p43
      %p45 = scmp.ne.s32.totalorder %s37, %s40
      %p46 = scmp.eq.s32.totalorder %s13, 0
      %p47 = por %p45, %p46
      %p48 = scmp.ne.s32.totalorder %s37, %s40
      %p49 = scmp.eq.s32.totalorder %s18, 3
      %p50 = por %p48, %p49
      %p51 = scmp.ne.s32.totalorder %s40, %s41
      %p52 = scmp.eq.s32.totalorder %s18, 0
      %p53 = por %p51, %p52
      %p54 = scmp.ne.s32.totalorder %s40, %s41
      %p55 = scmp.eq.s32.totalorder %s19, 3
      %p56 = por %p54, %p55
      %p58 = scmp.ne.s32.totalorder %s41, %s57
      %p59 = scmp.eq.s32.totalorder %s19, 0
      %p60 = por %p58, %p59
      %s61 = ssub.s32 %s20, %s32
      %s62 = ssub.s32 %s21, %s28
      %s63 = sor.u32 %s61, %s62
      %p64 = scmp.eq.s32.totalorder %s63, 0
      %s66 = sadd.s32 %s65, 1
      %s67 = scalar_select %p64, %s65, %s66
      %p70 = pneg %p64
      %p71 = scmp.eq.s32.totalorder %s13, 3
      %p72 = por %p70, %p71
      %p73 = scmp.ne.s32.totalorder %s65, %s68
      %p74 = scmp.eq.s32.totalorder %s13, 0
      %p75 = por %p73, %p74
      %p76 = scmp.ne.s32.totalorder %s65, %s68
      %p77 = scmp.eq.s32.totalorder %s18, 3
      %p78 = por %p76, %p77
      %p79 = scmp.ne.s32.totalorder %s68, %s69
      %p80 = scmp.eq.s32.totalorder %s18, 0
      %p81 = por %p79, %p80
      %p82 = scmp.ne.s32.totalorder %s68, %s69
      %p83 = scmp.eq.s32.totalorder %s19, 3
      %p84 = por %p82, %p83
      %p86 = scmp.ne.s32.totalorder %s69, %s85
      %p87 = scmp.eq.s32.totalorder %s19, 0
      %p88 = por %p86, %p87
      %p89 = scmp.le.s32.totalorder 1, %s13
      %p90 = scmp.lt.s32.totalorder %s13, 5
      %p91 = pnand %p89, %p90
      %p92 = pneg %p91
      // Predicated region
      $region9: #{tpu_custom_call.1} parent=5 // pred_check
        _
      $region10: #{tpu_custom_call.1} parent=5 // pred_check_branch
        %94 = sbr.rel (%p91) target = $region12
      $region11: #{tpu_custom_call.1} parent=5 // pred_region
        %s95 = ssub.s32 %s13, 1
      $region12: #{tpu_custom_call.1} parent=5 // pred_fallthru
        _
      %p96 = scmp.lt.s32.totalorder %s13, 4
      // Predicated region
      $region13: #{tpu_custom_call.1} parent=5 // pred_check
        %p97 = pneg %p96
      $region14: #{tpu_custom_call.1} parent=5 // pred_check_branch
        %99 = sbr.rel (%p97) target = $region16
      $region15: #{tpu_custom_call.1} parent=5 // pred_region
        // Predicated region
        $region17: #{tpu_custom_call.1} parent=15 // pred_check
          %p100 = pneg %p47
        $region18: #{tpu_custom_call.1} parent=15 // pred_check_branch
          %102 = sbr.rel (%p100) target = $region20
        $region19: #{tpu_custom_call.1} parent=15 // pred_region
          %s103 = sand.u32 %s37, 1
          %s104 = scalar_lea.sflag [#allocation3], %s103
          %s105 = sand.u32 %s37, 1
          %s106 = smul.addr %s105, 4
          %s107 = scalar_lea.vmem [#allocation2], %s106
          %s109 = ssub.s32 64, 64
          %110 = vsyncadd %s104, %s109
          %s111 = smul.addr %s20, 2
          %s112 = sadd.s32 %s21, %s111
          %s113 = smul.addr %s112, 32
          %s114 = scalar_lea.hbm %s0, %s113
          %s115 = sshll.u32 %s107, 4
          %s116 = int_to_ptr.vmem [resolvable:$true] %s115
          %121 = dma.hbm_to_vmem [thread:$0]  %s114, 64, %s116, %s104, 32, 32, 2
        $region20: #{tpu_custom_call.1} parent=15 // pred_fallthru
          _
      $region16: #{tpu_custom_call.1} parent=5 // pred_fallthru
        _
      %p122 = scmp.le.s32.totalorder 1, %s13
      %p123 = scmp.lt.s32.totalorder %s13, 5
      %p124 = pnand %p122, %p123
      %p125 = pneg %p124
      // Predicated region
      $region21: #{tpu_custom_call.1} parent=5 // pred_check
        _
      $region22: #{tpu_custom_call.1} parent=5 // pred_check_branch
        %127 = sbr.rel (%p124) target = $region24
      $region23: #{tpu_custom_call.1} parent=5 // pred_region
        %s128 = ssub.s32 %s13, 1
        %s129 = sand.u32 %s40, 1
        %s130 = scalar_lea.sflag [#allocation3], %s129
        %s131 = sand.u32 %s40, 1
        %s132 = smul.addr %s131, 4
        %s133 = scalar_lea.vmem [#allocation2], %s132
        // Predicated region
        $region25: #{tpu_custom_call.1} parent=23 // pred_check
          %p134 = pneg %p53
        $region26: #{tpu_custom_call.1} parent=23 // pred_check_branch
          %136 = sbr.rel (%p134) target = $region28
        $region27: #{tpu_custom_call.1} parent=23 // pred_region
          %137 = dma.done %s130, 64
        $region28: #{tpu_custom_call.1} parent=23 // pred_fallthru
          _
        %s138 = sand.u32 %s40, 1
        %s139 = scalar_lea.sflag [#allocation3], %s138
        %s140 = sand.u32 %s40, 1
        %s141 = smul.addr %s140, 4
        %s142 = scalar_lea.vmem [#allocation2], %s141
        %p143 = pneg %p53
        %p144 = pneg %p50
        %p145 = pneg %p81
        %p146 = pneg %p78
        %s147 = sand.u32 %s68, 1
        %s148 = scalar_lea.sflag [#allocation4], %s147
        %s149 = sand.u32 %s68, 1
        %s150 = smul.addr %s149, 4
        %s151 = scalar_lea.vmem [#allocation5], %s150
        %v152 = vld [vmem:[%s133] sm:$0x3]
        %v153 = vld [vmem:[%s133 + $0x2] sm:$0x3]
        %vm154 = vcmask 1041408
        %v155 = vsel %vm154, %v152, -inf
        %v156 = vsel %vm154, %v153, -inf
        %v157 = vmax.f32 %v155, %v156
        %v158 = vsub.f32 %v152, %v157
        %v159 = vsub.f32 %v153, %v157
        %v160 = vmul.f32 %v158, 1.442695
        %v161 = vpow.pop %v160
        %v162 = vmul.f32 %v159, 1.442695
        %v163 = vpow.pop %v162
        %v164 = vsel %vm154, %v161, 0.0
        %v165 = vsel %vm154, %v163, 0.0
        %v166 = vadd.f32 %v164, %v165
        %v167 = vrcp.pop %v166
        %v168 = vmul.f32 %v161, %v167
        %v169 = vmul.f32 %v163, %v167
        %170 = vst [vmem:[%s151] sm:$0x3] %v168
        %171 = vst [vmem:[%s151 + $0x2] sm:$0x3] %v169
        %s172 = sand.u32 %s68, 1
        %s173 = scalar_lea.sflag [#allocation4], %s172
        %s174 = sand.u32 %s68, 1
        %s175 = smul.addr %s174, 4
        %s176 = scalar_lea.vmem [#allocation5], %s175
        // Predicated region
        $region29: #{tpu_custom_call.1} parent=23 // pred_check
          %p177 = pneg %p78
        $region30: #{tpu_custom_call.1} parent=23 // pred_check_branch
          %179 = sbr.rel (%p177) target = $region32
        $region31: #{tpu_custom_call.1} parent=23 // pred_region
          %s181 = ssub.s32 64, 64
          %182 = vsyncadd %s173, %s181
          %s183 = smul.addr %s22, 2
          %s184 = sadd.s32 %s23, %s183
          %s185 = smul.addr %s184, 32
          %s186 = scalar_lea.hbm %s1, %s185
          %s187 = sshll.u32 %s176, 4
          %s188 = int_to_ptr.vmem [resolvable:$true] %s187
          %193 = dma.vmem_to_hbm [thread:$0]  %s188, 64, %s186, %s173, 32, 32, 2
        $region32: #{tpu_custom_call.1} parent=23 // pred_fallthru
          _
      $region24: #{tpu_custom_call.1} parent=5 // pred_fallthru
        _
      %p194 = scmp.le.s32.totalorder 2, %s13
      // Predicated region
      $region33: #{tpu_custom_call.1} parent=5 // pred_check
        %p195 = pneg %p194
      $region34: #{tpu_custom_call.1} parent=5 // pred_check_branch
        %197 = sbr.rel (%p195) target = $region36
      $region35: #{tpu_custom_call.1} parent=5 // pred_region
        %s198 = ssub.s32 %s13, 2
        // Predicated region
        $region37: #{tpu_custom_call.1} parent=35 // pred_check
          %p199 = pneg %p84
        $region38: #{tpu_custom_call.1} parent=35 // pred_check_branch
          %201 = sbr.rel (%p199) target = $region40
        $region39: #{tpu_custom_call.1} parent=35 // pred_region
          %s202 = sand.u32 %s69, 1
          %s203 = scalar_lea.sflag [#allocation4], %s202
          %s204 = sand.u32 %s69, 1
          %s205 = smul.addr %s204, 4
          %s206 = scalar_lea.vmem [#allocation5], %s205
          %207 = dma.done %s203, 64
        $region40: #{tpu_custom_call.1} parent=35 // pred_fallthru
          _
      $region36: #{tpu_custom_call.1} parent=5 // pred_fallthru
        _
    $region6: #{tpu_custom_call.1} parent=1 // loop_footer
      %s17 = sadd.s32 1, %s13
    $region7: #{tpu_custom_call.1} parent=1 // loop_footer_branch
      %12 = sbr.rel target = $region3
    $region8: #{tpu_custom_call.1} parent=1 // loop_exit
      _
    %208 = vsyncpa [#allocation3], 1
    %s209 = scalar_lea.sflag [#allocation3], 1
    %210 = vsyncpa %s209, 1
    %211 = vsyncpa [#allocation4], 1
    %s212 = scalar_lea.sflag [#allocation4], 1
    %213 = vsyncpa %s212, 1

</llo_original>
